<compile_context>
chip_gen: v5e
topology: v5e:2x2
jax: 0.10.0
libtpu: 0.0.40
codegen_flags: <defaults>
</compile_context>

<pallas_src>
import jax
import jax.numpy as jnp
from jax.experimental import pallas as pl
from jax.experimental.pallas import tpu as pltpu


# ----------------------------- kernel --------------------------------------

def _lrp_linear_fused_kernel(x_ref, wt_ref, b_ref, wsum_ref, y_ref, rel_ref):
    # x: (TM, K), wt: (K, N) (pre-transposed), b: (1, N), wsum: (1, K)
    x = x_ref[...]
    # Forward: MXU matmul contracting last-of-LHS with first-of-RHS, f32 acc.
    acc = jnp.dot(x, wt_ref[...], preferred_element_type=jnp.float32)
    y_ref[...] = (acc + b_ref[...]).astype(y_ref.dtype)
    # Relevance (sum(y) loss): grad wrt x is colsum(W), precomputed in wrapper.
    rel_ref[...] = (x.astype(jnp.float32) * wsum_ref[...]).astype(rel_ref.dtype)


# ----------------------------- wrapper --------------------------------------

def lrp_linear_fused(x2d, w, b, *, tm_max=512):
    """Fused forward + sum()-loss relevance for LRPLayer(nn.Linear).

    x2d: (M, K) activations, w: (N, K) torch-Linear layout, b: (N,).
    Returns (y: (M, N), rel: (M, K)).
    """
    M, K = x2d.shape
    N, K2 = w.shape
    assert K == K2

    # One-time XLA-side prep (loop-invariant across all M tiles).
    wt = w.T                                      # (K, N) — clean MXU layout
    b2d = b.reshape(1, N).astype(jnp.float32)     # (1, N)
    wsum = jnp.sum(w, axis=0, keepdims=True).astype(jnp.float32)  # (1, K)

    # Tile the M (= B*S) axis. Full-extent K/N satisfy the (8,128) rule by
    # equaling the array dims; TM is either the full M or a multiple of 8.
    tm = M if M <= tm_max else tm_max
    grid = (pl.cdiv(M, tm),)

    y, rel = pl.pallas_call(
        _lrp_linear_fused_kernel,
        out_shape=(
            jax.ShapeDtypeStruct((M, N), x2d.dtype),
            jax.ShapeDtypeStruct((M, K), x2d.dtype),
        ),
        grid=grid,
        in_specs=[
            pl.BlockSpec((tm, K), lambda i: (i, 0)),   # x tile
            pl.BlockSpec((K, N), lambda i: (0, 0)),    # W^T (constant block)
            pl.BlockSpec((1, N), lambda i: (0, 0)),    # bias (constant block)
            pl.BlockSpec((1, K), lambda i: (0, 0)),    # colsum(W) (constant)
        ],
        out_specs=(
            pl.BlockSpec((tm, N), lambda i: (i, 0)),   # y tile
            pl.BlockSpec((tm, K), lambda i: (i, 0)),   # relevance tile
        ),
        compiler_params=pltpu.CompilerParams(
            dimension_semantics=("parallel",),
        ),
    )(x2d, wt, b2d, wsum)
    return y, rel


def lrp_layer_apply(x, w, b):
    """LRPLayer(nn.Linear).forward + lrp_backpass(sum loss).

    x: (B, S, H_in) -> y: (B, S, H_out), rel: (B, S, H_in).
    LRPTensor bookkeeping (retain_grad, hook registration) is autograd
    machinery with no forward-time compute; the numerical forward is exactly
    the wrapped Linear.
    """
    B, S, H = x.shape
    x2d = x.reshape(B * S, H)
    y2d, rel2d = lrp_linear_fused(x2d, w, b)
    return y2d.reshape(B, S, w.shape[0]), rel2d.reshape(B, S, H)


# ------------------------------- main ---------------------------------------

if __name__ == "__main__":
    key = jax.random.PRNGKey(0)
    kx, kw, kb = jax.random.split(key, 3)

    B, S, H_in, H_out = 2, 8, 32, 32
    x = jax.random.normal(kx, (B, S, H_in), dtype=jnp.float32)
    # "nn.Linear(32, 32)" parameters (torch layout: W is (out, in))
    w = jax.random.normal(kw, (H_out, H_in), dtype=jnp.float32) * 0.05
    b = jax.random.normal(kb, (H_out,), dtype=jnp.float32) * 0.01

    y, rel = lrp_layer_apply(x, w, b)
    y = jax.block_until_ready(y)
    rel = jax.block_until_ready(rel)

    # reference check in plain JAX
    y_ref = (x.reshape(-1, H_in) @ w.T + b).reshape(B, S, H_out)
    rel_ref = (x.reshape(-1, H_in) * jnp.sum(w, axis=0)).reshape(B, S, H_in)
    assert jnp.allclose(y, y_ref, atol=1e-5, rtol=1e-5)
    assert jnp.allclose(rel, rel_ref, atol=1e-5, rtol=1e-5)

    # TODO(synk): LRPTensor's grad-hook relevance accumulation across arbitrary
    # autograd graphs has no static Pallas equivalent; only the wrapped-Linear
    # forward and the sum()-loss backpass (grad * input) are implemented here.
    print("KERNEL_OK")
</pallas_src>

<mosaic_0001>
module attributes {stable_mosaic.version = 11 : i64} {
  func.func @_lrp_linear_fused_kernel(%arg0: i32, %arg1: memref<16x32xf32, #tpu.memory_space<vmem>>, %arg2: memref<32x32xf32, #tpu.memory_space<vmem>>, %arg3: memref<1x32xf32, #tpu.memory_space<vmem>>, %arg4: memref<1x32xf32, #tpu.memory_space<vmem>>, %arg5: memref<16x32xf32, #tpu.memory_space<vmem>>, %arg6: memref<16x32xf32, #tpu.memory_space<vmem>>) attributes {dimension_semantics = [#tpu.dimension_semantics<parallel>], iteration_bounds = array<i64: 1>, scalar_prefetch = 0 : i64, scratch_operands = 0 : i64, tpu.core_type = #tpu.core_type<tc>, window_params = [{transform_indices = @transform_0, window_bounds = array<i64: 16, 32>}, {pipeline_mode = #tpu.pipeline_mode<synchronous>, transform_indices = @transform_1, window_bounds = array<i64: 32, 32>}, {pipeline_mode = #tpu.pipeline_mode<synchronous>, transform_indices = @transform_2, window_bounds = array<i64: 1, 32>}, {pipeline_mode = #tpu.pipeline_mode<synchronous>, transform_indices = @transform_3, window_bounds = array<i64: 1, 32>}, {transform_indices = @transform_4, window_bounds = array<i64: 16, 32>}, {transform_indices = @transform_5, window_bounds = array<i64: 16, 32>}]} {
    %c0 = arith.constant 0 : index
    %c0_0 = arith.constant 0 : index
    %0 = vector.load %arg1[%c0, %c0_0] : memref<16x32xf32, #tpu.memory_space<vmem>>, vector<16x32xf32>
    %c0_1 = arith.constant 0 : index
    %c0_2 = arith.constant 0 : index
    %1 = vector.load %arg2[%c0_1, %c0_2] : memref<32x32xf32, #tpu.memory_space<vmem>>, vector<32x32xf32>
    %cst = arith.constant dense<0.000000e+00> : vector<16x32xf32>
    %2 = tpu.matmul %0, %1, %cst {dimension_numbers = #tpu.dot_dimension_numbers<[1], [0], [0], [1], [0, 0, 1, 1], [], []>} : vector<16x32xf32>, vector<32x32xf32>, vector<16x32xf32> -> vector<16x32xf32>
    %c0_3 = arith.constant 0 : index
    %c0_4 = arith.constant 0 : index
    %3 = vector.load %arg3[%c0_3, %c0_4] : memref<1x32xf32, #tpu.memory_space<vmem>>, vector<1x32xf32>
    %4 = vector.broadcast %3 : vector<1x32xf32> to vector<16x32xf32>
    %5 = arith.addf %2, %4 : vector<16x32xf32>
    %c0_5 = arith.constant 0 : index
    %c0_6 = arith.constant 0 : index
    %6 = vector.load %arg5[%c0_5, %c0_6] : memref<16x32xf32, #tpu.memory_space<vmem>>, vector<16x32xf32>
    tpu.vector_store %arg5[%c0_5, %c0_6], %5 {strides = array<i32>} : memref<16x32xf32, #tpu.memory_space<vmem>>, vector<16x32xf32>,
    %c0_7 = arith.constant 0 : index
    %c0_8 = arith.constant 0 : index
    %7 = vector.load %arg4[%c0_7, %c0_8] : memref<1x32xf32, #tpu.memory_space<vmem>>, vector<1x32xf32>
    %8 = vector.broadcast %7 : vector<1x32xf32> to vector<16x32xf32>
    %9 = arith.mulf %0, %8 : vector<16x32xf32>
    %c0_9 = arith.constant 0 : index
    %c0_10 = arith.constant 0 : index
    %10 = vector.load %arg6[%c0_9, %c0_10] : memref<16x32xf32, #tpu.memory_space<vmem>>, vector<16x32xf32>
    tpu.vector_store %arg6[%c0_9, %c0_10], %9 {strides = array<i32>} : memref<16x32xf32, #tpu.memory_space<vmem>>, vector<16x32xf32>,
    return
  }
  func.func @transform_0(%arg0: i32) -> (i32, i32) {
    %c0_i32 = arith.constant 0 : i32
    %c0_i32_0 = arith.constant 0 : i32
    return %arg0, %c0_i32 : i32, i32
  }
  func.func @transform_1(%arg0: i32) -> (i32, i32) {
    %c0_i32 = arith.constant 0 : i32
    %c0_i32_0 = arith.constant 0 : i32
    %c0_i32_1 = arith.constant 0 : i32
    return %c0_i32, %c0_i32_0 : i32, i32
  }
  func.func @transform_2(%arg0: i32) -> (i32, i32) {
    %c0_i32 = arith.constant 0 : i32
    %c0_i32_0 = arith.constant 0 : i32
    %c0_i32_1 = arith.constant 0 : i32
    return %c0_i32, %c0_i32_0 : i32, i32
  }
  func.func @transform_3(%arg0: i32) -> (i32, i32) {
    %c0_i32 = arith.constant 0 : i32
    %c0_i32_0 = arith.constant 0 : i32
    %c0_i32_1 = arith.constant 0 : i32
    return %c0_i32, %c0_i32_0 : i32, i32
  }
  func.func @transform_4(%arg0: i32) -> (i32, i32) {
    %c0_i32 = arith.constant 0 : i32
    %c0_i32_0 = arith.constant 0 : i32
    return %arg0, %c0_i32 : i32, i32
  }
  func.func @transform_5(%arg0: i32) -> (i32, i32) {
    %c0_i32 = arith.constant 0 : i32
    %c0_i32_0 = arith.constant 0 : i32
    return %arg0, %c0_i32 : i32, i32
  }
}

</mosaic_0001>

<llo_original>
// kernel: tpu_custom_call.1
$region0: #{tpu_custom_call.1}
  #allocation0 [shape = 'u32[]', space=smem, size = 0x4, offset = 0x4, fixed_abs, tag = 'smem constant byte address 0x4 - core index']
  #allocation1 [shape = 'u32[72,128]{1,0:T(1,128)}', space=vmem, size = 0x9000, scoped, tag = 'internal scratch']
  %s0 = inlined_call_operand.hbm [shape: f32[16,32], index: 0, kind: input, shape index: {}]
  %s1 = inlined_call_operand.hbm [shape: f32[32,32], index: 1, kind: input, shape index: {}]
  %s2 = inlined_call_operand.vmem [shape: f32[1,32], index: 2, kind: input, shape index: {}]
  %s3 = inlined_call_operand.vmem [shape: f32[1,32], index: 3, kind: input, shape index: {}]
  %s4 = inlined_call_operand.hbm [shape: f32[16,32], index: 4, kind: output, shape index: {0}]
  %s5 = inlined_call_operand.hbm [shape: f32[16,32], index: 5, kind: output, shape index: {1}]
  %6 = xla_tuple %s4, %s5
  %s7 = sld [smem:[#allocation0]]
  $region42: #{tpu_custom_call.1} parent=0
    _
  %s9 = ssub.s32 1, %s7
  %s10 = scalar_select 0, %s9, %s7
  $region1: #{tpu_custom_call.1} parent=0
    #allocation2 [shape = 'u8[8192]{0}', space=vmem, size = 0x2000, scoped, tag = 'input window, operand 0, single buffered']
    #allocation3 [shape = 's32[1]{0}', space=sflag, size = 0x4, scoped, tag = 'scoped memory for tpu_custom_call.1']
    #allocation4 [shape = 's32[1]{0}', space=sflag, size = 0x4, scoped, tag = 'scoped memory for tpu_custom_call.1']
    #allocation5 [shape = 'u8[16384]{0}', space=vmem, size = 0x4000, scoped, tag = 'input window, operand 1, single buffered']
    #allocation6 [shape = 's32[1]{0}', space=sflag, size = 0x4, scoped, tag = 'scoped memory for tpu_custom_call.1']
    #allocation7 [shape = 'u8[8192]{0}', space=vmem, size = 0x2000, scoped, tag = 'output window, operand 0, single buffered']
    #allocation8 [shape = 'u8[8192]{0}', space=vmem, size = 0x2000, scoped, tag = 'output window, operand 1, single buffered']
    #allocation9 [shape = 's32[1]{0}', space=sflag, size = 0x4, scoped, tag = 'scoped memory for tpu_custom_call.1']
    %11 = vsyncpa [#allocation3], 0
    %12 = vsyncpa [#allocation6], 0
    %13 = vsyncpa [#allocation4], 0
    %14 = vsyncpa [#allocation9], 0
    // Predicated region
    $region2: #{tpu_custom_call.1} parent=1 // pred_check
      _
    $region3: #{tpu_custom_call.1} parent=1 // pred_check_branch
      %16 = sbr.rel (0) target = $region5
    $region4: #{tpu_custom_call.1} parent=1 // pred_region
      %18 = vsyncadd [#allocation3], 0
      %s19 = sshll.u32 %s0, 4
      %s20 = int_to_ptr.hbm [resolvable:$true] %s19
      %s21 = sshll.u32 [#allocation2], 4
      %s22 = int_to_ptr.vmem [resolvable:$true] %s21
      %27 = dma.hbm_to_vmem [thread:$0]  %s20, 256, %s22, [#allocation3], 128, 128, 8
    $region5: #{tpu_custom_call.1} parent=1 // pred_fallthru
      _
    // Predicated region
    $region6: #{tpu_custom_call.1} parent=1 // pred_check
      _
    $region7: #{tpu_custom_call.1} parent=1 // pred_check_branch
      %29 = sbr.rel (0) target = $region9
    $region8: #{tpu_custom_call.1} parent=1 // pred_region
      %31 = vsyncadd [#allocation6], 0
      %s32 = sshll.u32 %s1, 4
      %s33 = int_to_ptr.hbm [resolvable:$true] %s32
      %s34 = sshll.u32 [#allocation5], 4
      %s35 = int_to_ptr.vmem [resolvable:$true] %s34
      %40 = dma.hbm_to_vmem [thread:$0]  %s33, 512, %s35, [#allocation6], 128, 128, 8
    $region9: #{tpu_custom_call.1} parent=1 // pred_fallthru
      _
    // Predicated region
    $region10: #{tpu_custom_call.1} parent=1 // pred_check
      _
    $region11: #{tpu_custom_call.1} parent=1 // pred_check_branch
      %42 = sbr.rel (0) target = $region13
    $region12: #{tpu_custom_call.1} parent=1 // pred_region
      _
    $region13: #{tpu_custom_call.1} parent=1 // pred_fallthru
      _
    // Predicated region
    $region14: #{tpu_custom_call.1} parent=1 // pred_check
      _
    $region15: #{tpu_custom_call.1} parent=1 // pred_check_branch
      %44 = sbr.rel (0) target = $region17
    $region16: #{tpu_custom_call.1} parent=1 // pred_region
      _
    $region17: #{tpu_custom_call.1} parent=1 // pred_fallthru
      _
    // Predicated region
    $region18: #{tpu_custom_call.1} parent=1 // pred_check
      _
    $region19: #{tpu_custom_call.1} parent=1 // pred_check_branch
      %46 = sbr.rel (0) target = $region21
    $region20: #{tpu_custom_call.1} parent=1 // pred_region
      %48 = dma.done [#allocation3], 256
    $region21: #{tpu_custom_call.1} parent=1 // pred_fallthru
      _
    // Predicated region
    $region22: #{tpu_custom_call.1} parent=1 // pred_check
      _
    $region23: #{tpu_custom_call.1} parent=1 // pred_check_branch
      %50 = sbr.rel (0) target = $region25
    $region24: #{tpu_custom_call.1} parent=1 // pred_region
      %52 = dma.done [#allocation6], 512
    $region25: #{tpu_custom_call.1} parent=1 // pred_fallthru
      _
    %v53 = vld [vmem:[#allocation2] sm:$0xff]
    %v54 = vld [vmem:[#allocation2 + $0x8] sm:$0xff]
    %v55 = vld [vmem:[#allocation5] sm:$0xff]
    %v56 = vld [vmem:[#allocation5 + $0x8] sm:$0xff]
    %v57 = vld [vmem:[#allocation5 + $0x10] sm:$0xff]
    %v58 = vld [vmem:[#allocation5 + $0x18] sm:$0xff]
    %v59 = vld [vmem:[%s2] sm:$0x1]
    %v61 = vperm.slane %v59, 0
    %vm63 = vcmask 261120
    %v65 = vsel %vm63, %v53, 0
    %v68 = vsel %vm63, %v54, 0
    %70 = vmatpush.msra.mxu0 0.0
    %71 = vmatpush.msra.mxu0 0.0
    %72 = vmatpush.msra.mxu0 0.0
    %73 = vmatpush.msra.mxu0 0.0
    %74 = vmatpush.msra.mxu0 0.0
    %75 = vmatpush.msra.mxu0 0.0
    %76 = vmatpush.msra.mxu0 0.0
    %77 = vmatpush.msra.mxu0 0.0
    %78 = vmatpush.msra.mxu0 0.0
    %79 = vmatpush.msra.mxu0 0.0
    %80 = vmatpush.msra.mxu0 0.0
    %81 = vmatpush.msra.mxu0 0.0
    %82 = vmatpush.msra.mxu0 %v58
    %83 = vmatpush.msra.mxu0 %v57
    %84 = vmatpush.msra.mxu0 %v56
    %85 = vmatpush.msra.mxu0 %v55
    %86 = vmatmul.f32.gmra.mxu0 %v65
    %v87 = vpop.f32.mrf.mxu0
    %v88 = vadd.f32 %v61, %v87
    %89 = vmatmul.f32.gmra.mxu0 %v68
    %v90 = vpop.f32.mrf.mxu0
    %v91 = vadd.f32 %v61, %v90
    %92 = vdwg.mxu0
    %93 = vst.msk [vmem:[#allocation7] sm:$0xff] %vm63, %v88
    %94 = vst.msk [vmem:[#allocation7 + $0x8] sm:$0xff] %vm63, %v91
    %v95 = vld [vmem:[%s3] sm:$0x1]
    %v97 = vperm.slane %v95, 0
    %v99 = vmul.f32 %v53, %v97
    %v100 = vmul.f32 %v54, %v97
    %101 = vst.msk [vmem:[#allocation8] sm:$0xff] %vm63, %v99
    %102 = vst.msk [vmem:[#allocation8 + $0x8] sm:$0xff] %vm63, %v100
    // Predicated region
    $region26: #{tpu_custom_call.1} parent=1 // pred_check
      _
    $region27: #{tpu_custom_call.1} parent=1 // pred_check_branch
      %104 = sbr.rel (0) target = $region29
    $region28: #{tpu_custom_call.1} parent=1 // pred_region
      %106 = vsyncadd [#allocation4], 0
      %s107 = sshll.u32 [#allocation7], 4
      %s108 = int_to_ptr.vmem [resolvable:$true] %s107
      %s109 = sshll.u32 %s4, 4
      %s110 = int_to_ptr.hbm [resolvable:$true] %s109
      %115 = dma.vmem_to_hbm [thread:$0]  %s108, 256, %s110, [#allocation4], 128, 128, 8
    $region29: #{tpu_custom_call.1} parent=1 // pred_fallthru
      _
    // Predicated region
    $region30: #{tpu_custom_call.1} parent=1 // pred_check
      _
    $region31: #{tpu_custom_call.1} parent=1 // pred_check_branch
      %117 = sbr.rel (0) target = $region33
    $region32: #{tpu_custom_call.1} parent=1 // pred_region
      %119 = vsyncadd [#allocation9], 0
      %s120 = sshll.u32 [#allocation8], 4
      %s121 = int_to_ptr.vmem [resolvable:$true] %s120
      %s122 = sshll.u32 %s5, 4
      %s123 = int_to_ptr.hbm [resolvable:$true] %s122
      %128 = dma.vmem_to_hbm [thread:$0]  %s121, 256, %s123, [#allocation9], 128, 128, 8
    $region33: #{tpu_custom_call.1} parent=1 // pred_fallthru
      _
    // Predicated region
    $region34: #{tpu_custom_call.1} parent=1 // pred_check
      _
    $region35: #{tpu_custom_call.1} parent=1 // pred_check_branch
      %130 = sbr.rel (0) target = $region37
    $region36: #{tpu_custom_call.1} parent=1 // pred_region
      %132 = dma.done [#allocation4], 256
    $region37: #{tpu_custom_call.1} parent=1 // pred_fallthru
      _
    // Predicated region
    $region38: #{tpu_custom_call.1} parent=1 // pred_check
      _
    $region39: #{tpu_custom_call.1} parent=1 // pred_check_branch
      %134 = sbr.rel (0) target = $region41
    $region40: #{tpu_custom_call.1} parent=1 // pred_region
      %136 = dma.done [#allocation9], 256
    $region41: #{tpu_custom_call.1} parent=1 // pred_fallthru
      _
    %137 = vsyncpa [#allocation3], 1
    %138 = vsyncpa [#allocation6], 1
    %139 = vsyncpa [#allocation4], 1
    %140 = vsyncpa [#allocation9], 1

</llo_original>
